<compile_context>
chip_gen: v5e
topology: v5e:2x2
jax: 0.10.0
libtpu: 0.0.40
codegen_flags: <defaults>
</compile_context>

<pallas_src>
import functools

import numpy as np
import jax
import jax.numpy as jnp
from jax import lax
from jax.experimental import pallas as pl
from jax.experimental.pallas import tpu as pltpu


def _strided_slice(x, axis, num, stride):
    """x[..., 0 : stride*(num-1)+1 : stride, ...] along `axis` (values, not refs)."""
    if stride == 1:
        return lax.slice_in_dim(x, 0, num, axis=axis)
    # TODO(synk): stride > 1 (DARTS reduce cells) uses a strided value-slice; verify the
    # Mosaic lowering on hardware before relying on it in production.
    return lax.slice_in_dim(x, 0, (num - 1) * stride + 1, stride=stride, axis=axis)


def _pool_stats_kernel(*refs, pool_type, k, stride, pad, H, W, H_out, W_out):
    """Pass 1: pooling + per-channel sum / sum-of-squares (channels-last blocks).

    refs = (x, [rcw, rch,] pooled_out, s1_out, s2_out)
    grid = (C blocks ["parallel"], N blocks ["arbitrary" — stats accumulate]).
    """
    if pool_type == "avg":
        x_ref, rcw_ref, rch_ref, pooled_ref, s1_ref, s2_ref = refs
    else:
        x_ref, pooled_ref, s1_ref, s2_ref = refs
        rcw_ref = rch_ref = None

    pad_val = -jnp.inf if pool_type == "max" else 0.0
    combine = jnp.maximum if pool_type == "max" else jnp.add

    xf = x_ref[...].astype(jnp.float32)                     # (Nb, H, W, Cb)
    Nb, _, _, Cb = xf.shape

    # --- W-direction taps: XLU roll + boundary mask (no padded copy, no offset stores).
    last_kept_w = stride * (W_out - 1)
    y = None
    for kj in range(k):
        sv = kj - pad                                        # tap offset vs. output col
        tap = xf if sv == 0 else pltpu.roll(xf, (-sv) % W, axis=2)
        if sv < 0 or sv + last_kept_w >= W:                  # tap can fall off the edge
            col = lax.broadcasted_iota(jnp.int32, (1, 1, W, Cb), 2)
            valid = jnp.logical_and(col + sv >= 0, col + sv < W)
            tap = jnp.where(valid, tap, pad_val)
        y = tap if y is None else combine(y, tap)
    rowred = _strided_slice(y, 2, W_out, stride)             # (Nb, H, W_out, Cb)

    if pool_type == "avg":                                   # separable 1/count, W factor
        rowred = rowred * rcw_ref[...]

    # --- H-direction taps: major-dim slices + constant pad rows (aligned vreg moves).
    def h_tap(sv):
        if sv == 0:
            return rowred
        if sv > 0:
            pad_rows = jnp.full((Nb, sv, W_out, Cb), pad_val, jnp.float32)
            return jnp.concatenate([rowred[:, sv:, :, :], pad_rows], axis=1)
        pad_rows = jnp.full((Nb, -sv, W_out, Cb), pad_val, jnp.float32)
        return jnp.concatenate([pad_rows, rowred[:, :H + sv, :, :]], axis=1)

    z = None
    for ki in range(k):
        tap = h_tap(ki - pad)
        z = tap if z is None else combine(z, tap)
    pooled = _strided_slice(z, 1, H_out, stride)             # (Nb, H_out, W_out, Cb)

    if pool_type == "avg":                                   # separable 1/count, H factor
        pooled = pooled * rch_ref[...]

    pooled_ref[...] = pooled.astype(pooled_ref.dtype)

    # --- Per-channel batch statistics, accumulated across the (arbitrary) N grid axis.
    @pl.when(pl.program_id(1) == 0)
    def _():
        s1_ref[...] = jnp.zeros_like(s1_ref)
        s2_ref[...] = jnp.zeros_like(s2_ref)

    s1_ref[...] += jnp.sum(pooled, axis=(0, 1, 2), keepdims=True)
    s2_ref[...] += jnp.sum(pooled * pooled, axis=(0, 1, 2), keepdims=True)


def _bn_apply_kernel(pooled_ref, scale_ref, shift_ref, out_ref):
    """Pass 2: y = pooled * scale + shift (folded BatchNorm affine), lane-dense."""
    out_ref[...] = (pooled_ref[...].astype(jnp.float32) * scale_ref[...]
                    + shift_ref[...]).astype(out_ref.dtype)


def _axis_reciprocal_counts(size_in, size_out, k, stride, pad):
    """1 / (valid taps along one axis) for AvgPool2d(count_include_pad=False); static."""
    o = np.arange(size_out) * stride - pad
    cnt = np.zeros((size_out,), np.float32)
    for t in range(k):
        cnt += ((o + t >= 0) & (o + t < size_in)).astype(np.float32)
    return (1.0 / cnt).astype(np.float32)


def _vmem_limits():
    """Generation-aware scoped-VMEM limit and per-step working budget."""
    try:
        cap = int(pltpu.get_tpu_info().vmem_capacity_bytes)   # 64 MiB v7x, 128 MiB v5e/v6e
    except Exception:
        cap = 64 * 1024 * 1024                                # conservative fallback
    limit = min(cap * 3 // 4, 96 * 1024 * 1024)
    budget = limit // 2                                       # headroom for compiler temps
    return limit, budget


def _pick_blocks(N, C, H, W, H_out, W_out, x_itemsize, pooled_itemsize, budget):
    """Largest (batch, channel) block fitting the VMEM budget. Raises if nothing fits."""
    cb_opts = sorted({C} | {d for d in range(128, C, 128) if C % d == 0}, reverse=True)
    nb_opts = sorted({d for d in range(1, N + 1) if N % d == 0}, reverse=True)

    def footprint(nb, cb):
        x_blk = 2 * nb * H * W * cb * x_itemsize                  # double-buffered input
        out_blk = 2 * nb * H_out * W_out * cb * pooled_itemsize   # double-buffered output
        temps = 4 * nb * cb * (3 * H * W + 2 * H * W_out + 2 * H_out * W_out)  # f32 temps
        return x_blk + out_blk + temps

    for cb in cb_opts:
        for nb in nb_opts:
            if footprint(nb, cb) <= budget:
                return nb, cb
    raise ValueError(
        f"PoolBN: no (batch, channel) block of x[N={N},H={H},W={W},C={C}] fits the VMEM "
        f"budget of {budget} bytes; spatial tiling would be required for this shape.")


def pool_bn(x, gamma, beta, *, pool_type="max", kernel_size=3, stride=1, padding=1,
            eps=1e-5):
    """x: (N, C, H, W). gamma/beta: (C,). Returns (N, C, H_out, W_out) in x.dtype."""
    pool_type = pool_type.lower()
    if pool_type not in ("max", "avg"):
        raise ValueError(pool_type)
    N, C, H, W = x.shape
    k, s, p = kernel_size, stride, padding
    H_out = (H + 2 * p - k) // s + 1
    W_out = (W + 2 * p - k) // s + 1

    # Layout plumbing only: channels-last so C rides the lane axis; HBM dtype unchanged.
    # TODO(synk): for C < 128 (early DARTS cells) the lane axis is mostly masked; a
    # lane-dense re-layout (folding W_out*C onto lanes) is a possible further win.
    x_nhwc = jnp.transpose(x, (0, 2, 3, 1))                  # (N, H, W, C)
    pooled_dtype = x.dtype

    vmem_limit, budget = _vmem_limits()
    Nb, Cb = _pick_blocks(N, C, H, W, H_out, W_out,
                          np.dtype(x.dtype).itemsize, np.dtype(pooled_dtype).itemsize,
                          budget)
    grid = (C // Cb, N // Nb)

    inputs = [x_nhwc]
    in_specs = [pl.BlockSpec((Nb, H, W, Cb), lambda c, n: (n, 0, 0, c))]
    if pool_type == "avg":
        rcw = jnp.asarray(_axis_reciprocal_counts(W, W_out, k, s, p).reshape(1, 1, W_out, 1))
        rch = jnp.asarray(_axis_reciprocal_counts(H, H_out, k, s, p).reshape(1, H_out, 1, 1))
        inputs += [rcw, rch]
        in_specs += [pl.BlockSpec((1, 1, W_out, 1), lambda c, n: (0, 0, 0, 0)),
                     pl.BlockSpec((1, H_out, 1, 1), lambda c, n: (0, 0, 0, 0))]

    kernel1 = functools.partial(_pool_stats_kernel, pool_type=pool_type, k=k, stride=s,
                                pad=p, H=H, W=W, H_out=H_out, W_out=W_out)

    pooled, s1, s2 = pl.pallas_call(
        kernel1,
        out_shape=(jax.ShapeDtypeStruct((N, H_out, W_out, C), pooled_dtype),
                   jax.ShapeDtypeStruct((1, 1, 1, C), jnp.float32),
                   jax.ShapeDtypeStruct((1, 1, 1, C), jnp.float32)),
        grid=grid,
        in_specs=in_specs,
        out_specs=(pl.BlockSpec((Nb, H_out, W_out, Cb), lambda c, n: (n, 0, 0, c)),
                   pl.BlockSpec((1, 1, 1, Cb), lambda c, n: (0, 0, 0, c)),
                   pl.BlockSpec((1, 1, 1, Cb), lambda c, n: (0, 0, 0, c))),
        compiler_params=pltpu.CompilerParams(
            dimension_semantics=("parallel", "arbitrary"),
            vmem_limit_bytes=vmem_limit),
    )(*inputs)

    # Fold batch stats + affine into a per-channel scale/shift (O(C) work, plain JAX).
    cnt = float(N * H_out * W_out)
    mean = (s1.reshape(C)) / cnt
    var = jnp.maximum(s2.reshape(C) / cnt - mean * mean, 0.0)   # biased var (training mode)
    scale = gamma.astype(jnp.float32) * lax.rsqrt(var + eps)
    shift = beta.astype(jnp.float32) - mean * scale
    scale4 = scale.reshape(1, 1, 1, C)
    shift4 = shift.reshape(1, 1, 1, C)

    out_nhwc = pl.pallas_call(
        _bn_apply_kernel,
        out_shape=jax.ShapeDtypeStruct((N, H_out, W_out, C), x.dtype),
        grid=grid,
        in_specs=[pl.BlockSpec((Nb, H_out, W_out, Cb), lambda c, n: (n, 0, 0, c)),
                  pl.BlockSpec((1, 1, 1, Cb), lambda c, n: (0, 0, 0, c)),
                  pl.BlockSpec((1, 1, 1, Cb), lambda c, n: (0, 0, 0, c))],
        out_specs=pl.BlockSpec((Nb, H_out, W_out, Cb), lambda c, n: (n, 0, 0, c)),
        compiler_params=pltpu.CompilerParams(
            dimension_semantics=("parallel", "parallel"),
            vmem_limit_bytes=vmem_limit),
    )(pooled, scale4, shift4)

    # TODO(synk): nn.BatchNorm2d training-mode running_mean/running_var momentum updates
    # are module-state side effects (not part of the forward output) and are not emitted.
    return jnp.transpose(out_nhwc, (0, 3, 1, 2))             # back to NCHW


def _reference(x, gamma, beta, *, pool_type, kernel_size, stride, padding, eps=1e-5):
    """Pure-JAX reference matching PyTorch PoolBN.forward (BN in training mode)."""
    k, s, p = kernel_size, stride, padding
    window = (1, 1, k, k)
    strides = (1, 1, s, s)
    pads = ((0, 0), (0, 0), (p, p), (p, p))
    if pool_type == "max":
        pooled = lax.reduce_window(x, -jnp.inf, lax.max, window, strides, pads)
    else:
        sums = lax.reduce_window(x, 0.0, lax.add, window, strides, pads)
        cnts = lax.reduce_window(jnp.ones_like(x), 0.0, lax.add, window, strides, pads)
        pooled = sums / cnts
    mean = pooled.mean(axis=(0, 2, 3), keepdims=True)
    var = jnp.mean(jnp.square(pooled - mean), axis=(0, 2, 3), keepdims=True)
    return (pooled - mean) / jnp.sqrt(var + eps) * gamma.reshape(1, -1, 1, 1) \
        + beta.reshape(1, -1, 1, 1)


if __name__ == "__main__":
    key = jax.random.PRNGKey(0)
    N, C, H, W = 2, 4, 16, 16
    x = jax.random.normal(key, (N, C, H, W), dtype=jnp.float32)

    # BatchNorm2d(affine=True) deterministic init: weight=1, bias=0.
    gamma = jnp.ones((C,), dtype=jnp.float32)
    beta = jnp.zeros((C,), dtype=jnp.float32)

    ok = True
    for pool_type in ("max", "avg"):
        out = pool_bn(x, gamma, beta, pool_type=pool_type,
                      kernel_size=3, stride=1, padding=1)
        out = jax.block_until_ready(out)
        ref = _reference(x, gamma, beta, pool_type=pool_type,
                         kernel_size=3, stride=1, padding=1)
        ok = ok and bool(jnp.allclose(out, ref, atol=1e-4, rtol=1e-4))

    print("KERNEL_OK" if ok else "MISMATCH")
</pallas_src>

<mosaic_0001>
module attributes {stable_mosaic.version = 11 : i64} {
  func.func @_pool_stats_kernel(%arg0: i32, %arg1: i32, %arg2: memref<2x16x16x4xf32, #tpu.memory_space<vmem>>, %arg3: memref<2x16x16x4xf32, #tpu.memory_space<vmem>>, %arg4: memref<1x1x1x4xf32, #tpu.memory_space<vmem>>, %arg5: memref<1x1x1x4xf32, #tpu.memory_space<vmem>>) attributes {dimension_semantics = [#tpu.dimension_semantics<parallel>, #tpu.dimension_semantics<arbitrary>], iteration_bounds = array<i64: 1, 1>, scalar_prefetch = 0 : i64, scratch_operands = 0 : i64, tpu.core_type = #tpu.core_type<tc>, window_params = [{transform_indices = @transform_0, window_bounds = array<i64: 2, 16, 16, 4>}, {transform_indices = @transform_1, window_bounds = array<i64: 2, 16, 16, 4>}, {transform_indices = @transform_2, window_bounds = array<i64: 1, 1, 1, 4>}, {transform_indices = @transform_3, window_bounds = array<i64: 1, 1, 1, 4>}]} {
    %c0 = arith.constant 0 : index
    %c0_0 = arith.constant 0 : index
    %c0_1 = arith.constant 0 : index
    %c0_2 = arith.constant 0 : index
    %0 = vector.load %arg2[%c0, %c0_0, %c0_1, %c0_2] : memref<2x16x16x4xf32, #tpu.memory_space<vmem>>, vector<2x16x16x4xf32>
    %c1_i32 = arith.constant 1 : i32
    %1 = tpu.dynamic_rotate %0 by %c1_i32 dim 2 : vector<2x16x16x4xf32>, i32 -> vector<2x16x16x4xf32>
    %2 = tpu.iota {dimensions = array<i32: 2>} : vector<1x1x16x4xi32>
    %c-1_i32 = arith.constant -1 : i32
    %3 = vector.broadcast %c-1_i32 : i32 to vector<1x1x16x4xi32>
    %4 = arith.addi %2, %3 : vector<1x1x16x4xi32>
    %c0_i32 = arith.constant 0 : i32
    %5 = vector.broadcast %c0_i32 : i32 to vector<1x1x16x4xi32>
    %6 = arith.cmpi sge, %4, %5 : vector<1x1x16x4xi32>
    %c-1_i32_3 = arith.constant -1 : i32
    %7 = vector.broadcast %c-1_i32_3 : i32 to vector<1x1x16x4xi32>
    %8 = arith.addi %2, %7 : vector<1x1x16x4xi32>
    %c16_i32 = arith.constant 16 : i32
    %9 = vector.broadcast %c16_i32 : i32 to vector<1x1x16x4xi32>
    %10 = arith.cmpi slt, %8, %9 : vector<1x1x16x4xi32>
    %11 = arith.andi %6, %10 : vector<1x1x16x4xi1>
    %cst = arith.constant 0xFF800000 : f32
    %12 = vector.shape_cast %11 : vector<1x1x16x4xi1> to vector<1x1x16x4xi1>
    %13 = vector.broadcast %12 : vector<1x1x16x4xi1> to vector<2x16x16x4xi1>
    %14 = vector.broadcast %cst : f32 to vector<2x16x16x4xf32>
    %15 = arith.select %13, %1, %14 : vector<2x16x16x4xi1>, vector<2x16x16x4xf32>
    %16 = arith.maximumf %15, %0 : vector<2x16x16x4xf32>
    %c15_i32 = arith.constant 15 : i32
    %17 = tpu.dynamic_rotate %0 by %c15_i32 dim 2 : vector<2x16x16x4xf32>, i32 -> vector<2x16x16x4xf32>
    %18 = tpu.iota {dimensions = array<i32: 2>} : vector<1x1x16x4xi32>
    %c1_i32_4 = arith.constant 1 : i32
    %19 = vector.broadcast %c1_i32_4 : i32 to vector<1x1x16x4xi32>
    %20 = arith.addi %18, %19 : vector<1x1x16x4xi32>
    %c0_i32_5 = arith.constant 0 : i32
    %21 = vector.broadcast %c0_i32_5 : i32 to vector<1x1x16x4xi32>
    %22 = arith.cmpi sge, %20, %21 : vector<1x1x16x4xi32>
    %c1_i32_6 = arith.constant 1 : i32
    %23 = vector.broadcast %c1_i32_6 : i32 to vector<1x1x16x4xi32>
    %24 = arith.addi %18, %23 : vector<1x1x16x4xi32>
    %c16_i32_7 = arith.constant 16 : i32
    %25 = vector.broadcast %c16_i32_7 : i32 to vector<1x1x16x4xi32>
    %26 = arith.cmpi slt, %24, %25 : vector<1x1x16x4xi32>
    %27 = arith.andi %22, %26 : vector<1x1x16x4xi1>
    %cst_8 = arith.constant 0xFF800000 : f32
    %28 = vector.shape_cast %27 : vector<1x1x16x4xi1> to vector<1x1x16x4xi1>
    %29 = vector.broadcast %28 : vector<1x1x16x4xi1> to vector<2x16x16x4xi1>
    %30 = vector.broadcast %cst_8 : f32 to vector<2x16x16x4xf32>
    %31 = arith.select %29, %17, %30 : vector<2x16x16x4xi1>, vector<2x16x16x4xf32>
    %32 = arith.maximumf %16, %31 : vector<2x16x16x4xf32>
    %33 = vector.extract_strided_slice %32 {offsets = [0, 0, 0, 0], sizes = [2, 16, 16, 4], strides = [1, 1, 1, 1]} : vector<2x16x16x4xf32> to vector<2x16x16x4xf32>
    %cst_9 = arith.constant 0xFF800000 : f32
    %34 = vector.broadcast %cst_9 : f32 to vector<2x1x16x4xf32>
    %35 = vector.extract_strided_slice %33 {offsets = [0, 0, 0, 0], sizes = [2, 15, 16, 4], strides = [1, 1, 1, 1]} : vector<2x16x16x4xf32> to vector<2x15x16x4xf32>
    %36 = tpu.concatenate %34, %35 in 1 : vector<2x1x16x4xf32>, vector<2x15x16x4xf32> -> vector<2x16x16x4xf32>
    %37 = arith.maximumf %36, %33 : vector<2x16x16x4xf32>
    %cst_10 = arith.constant 0xFF800000 : f32
    %38 = vector.broadcast %cst_10 : f32 to vector<2x1x16x4xf32>
    %39 = vector.extract_strided_slice %33 {offsets = [0, 1, 0, 0], sizes = [2, 15, 16, 4], strides = [1, 1, 1, 1]} : vector<2x16x16x4xf32> to vector<2x15x16x4xf32>
    %40 = tpu.concatenate %39, %38 in 1 : vector<2x15x16x4xf32>, vector<2x1x16x4xf32> -> vector<2x16x16x4xf32>
    %41 = arith.maximumf %37, %40 : vector<2x16x16x4xf32>
    %42 = vector.extract_strided_slice %41 {offsets = [0, 0, 0, 0], sizes = [2, 16, 16, 4], strides = [1, 1, 1, 1]} : vector<2x16x16x4xf32> to vector<2x16x16x4xf32>
    %c0_11 = arith.constant 0 : index
    %c0_12 = arith.constant 0 : index
    %c0_13 = arith.constant 0 : index
    %c0_14 = arith.constant 0 : index
    %43 = vector.load %arg3[%c0_11, %c0_12, %c0_13, %c0_14] : memref<2x16x16x4xf32, #tpu.memory_space<vmem>>, vector<2x16x16x4xf32>
    tpu.vector_store %arg3[%c0_11, %c0_12, %c0_13, %c0_14], %42 {strides = array<i32>} : memref<2x16x16x4xf32, #tpu.memory_space<vmem>>, vector<2x16x16x4xf32>,
    %c0_i32_15 = arith.constant 0 : i32
    %44 = arith.cmpi eq, %arg1, %c0_i32_15 : i32
    %45 = arith.extui %44 : i1 to i32
    %c0_i32_16 = arith.constant 0 : i32
    %46 = arith.cmpi ne, %45, %c0_i32_16 : i32
    scf.if %46 {
      %cst_35 = arith.constant 0.000000e+00 : f32
      %58 = vector.broadcast %cst_35 : f32 to vector<1x1x1x4xf32>
      %c0_36 = arith.constant 0 : index
      %c0_37 = arith.constant 0 : index
      %c0_38 = arith.constant 0 : index
      %c0_39 = arith.constant 0 : index
      %59 = vector.load %arg4[%c0_36, %c0_37, %c0_38, %c0_39] : memref<1x1x1x4xf32, #tpu.memory_space<vmem>>, vector<1x1x1x4xf32>
      tpu.vector_store %arg4[%c0_36, %c0_37, %c0_38, %c0_39], %58 {strides = array<i32>} : memref<1x1x1x4xf32, #tpu.memory_space<vmem>>, vector<1x1x1x4xf32>,
      %cst_40 = arith.constant 0.000000e+00 : f32
      %60 = vector.broadcast %cst_40 : f32 to vector<1x1x1x4xf32>
      %c0_41 = arith.constant 0 : index
      %c0_42 = arith.constant 0 : index
      %c0_43 = arith.constant 0 : index
      %c0_44 = arith.constant 0 : index
      %61 = vector.load %arg5[%c0_41, %c0_42, %c0_43, %c0_44] : memref<1x1x1x4xf32, #tpu.memory_space<vmem>>, vector<1x1x1x4xf32>
      tpu.vector_store %arg5[%c0_41, %c0_42, %c0_43, %c0_44], %60 {strides = array<i32>} : memref<1x1x1x4xf32, #tpu.memory_space<vmem>>, vector<1x1x1x4xf32>,
    } else {
    }
    %c0_17 = arith.constant 0 : index
    %c0_18 = arith.constant 0 : index
    %c0_19 = arith.constant 0 : index
    %c0_20 = arith.constant 0 : index
    %47 = vector.load %arg4[%c0_17, %c0_18, %c0_19, %c0_20] : memref<1x1x1x4xf32, #tpu.memory_space<vmem>>, vector<1x1x1x4xf32>
    %cst_21 = arith.constant dense<0.000000e+00> : vector<4xf32>
    %48 = vector.multi_reduction <add>, %42, %cst_21 [0, 1, 2] : vector<2x16x16x4xf32> to vector<4xf32>
    %49 = vector.shape_cast %48 : vector<4xf32> to vector<1x1x1x4xf32>
    %50 = arith.addf %47, %49 : vector<1x1x1x4xf32>
    %c0_22 = arith.constant 0 : index
    %c0_23 = arith.constant 0 : index
    %c0_24 = arith.constant 0 : index
    %c0_25 = arith.constant 0 : index
    %51 = vector.load %arg4[%c0_22, %c0_23, %c0_24, %c0_25] : memref<1x1x1x4xf32, #tpu.memory_space<vmem>>, vector<1x1x1x4xf32>
    tpu.vector_store %arg4[%c0_22, %c0_23, %c0_24, %c0_25], %50 {strides = array<i32>} : memref<1x1x1x4xf32, #tpu.memory_space<vmem>>, vector<1x1x1x4xf32>,
    %c0_26 = arith.constant 0 : index
    %c0_27 = arith.constant 0 : index
    %c0_28 = arith.constant 0 : index
    %c0_29 = arith.constant 0 : index
    %52 = vector.load %arg5[%c0_26, %c0_27, %c0_28, %c0_29] : memref<1x1x1x4xf32, #tpu.memory_space<vmem>>, vector<1x1x1x4xf32>
    %53 = arith.mulf %42, %42 : vector<2x16x16x4xf32>
    %cst_30 = arith.constant dense<0.000000e+00> : vector<4xf32>
    %54 = vector.multi_reduction <add>, %53, %cst_30 [0, 1, 2] : vector<2x16x16x4xf32> to vector<4xf32>
    %55 = vector.shape_cast %54 : vector<4xf32> to vector<1x1x1x4xf32>
    %56 = arith.addf %52, %55 : vector<1x1x1x4xf32>
    %c0_31 = arith.constant 0 : index
    %c0_32 = arith.constant 0 : index
    %c0_33 = arith.constant 0 : index
    %c0_34 = arith.constant 0 : index
    %57 = vector.load %arg5[%c0_31, %c0_32, %c0_33, %c0_34] : memref<1x1x1x4xf32, #tpu.memory_space<vmem>>, vector<1x1x1x4xf32>
    tpu.vector_store %arg5[%c0_31, %c0_32, %c0_33, %c0_34], %56 {strides = array<i32>} : memref<1x1x1x4xf32, #tpu.memory_space<vmem>>, vector<1x1x1x4xf32>,
    return
  }
  func.func @transform_0(%arg0: i32, %arg1: i32) -> (i32, i32, i32, i32) {
    %c0_i32 = arith.constant 0 : i32
    %c0_i32_0 = arith.constant 0 : i32
    %c0_i32_1 = arith.constant 0 : i32
    return %arg1, %c0_i32, %c0_i32_0, %arg0 : i32, i32, i32, i32
  }
  func.func @transform_1(%arg0: i32, %arg1: i32) -> (i32, i32, i32, i32) {
    %c0_i32 = arith.constant 0 : i32
    %c0_i32_0 = arith.constant 0 : i32
    %c0_i32_1 = arith.constant 0 : i32
    return %arg1, %c0_i32, %c0_i32_0, %arg0 : i32, i32, i32, i32
  }
  func.func @transform_2(%arg0: i32, %arg1: i32) -> (i32, i32, i32, i32) {
    %c0_i32 = arith.constant 0 : i32
    %c0_i32_0 = arith.constant 0 : i32
    %c0_i32_1 = arith.constant 0 : i32
    %c0_i32_2 = arith.constant 0 : i32
    return %c0_i32, %c0_i32_0, %c0_i32_1, %arg0 : i32, i32, i32, i32
  }
  func.func @transform_3(%arg0: i32, %arg1: i32) -> (i32, i32, i32, i32) {
    %c0_i32 = arith.constant 0 : i32
    %c0_i32_0 = arith.constant 0 : i32
    %c0_i32_1 = arith.constant 0 : i32
    %c0_i32_2 = arith.constant 0 : i32
    return %c0_i32, %c0_i32_0, %c0_i32_1, %arg0 : i32, i32, i32, i32
  }
}

</mosaic_0001>

<llo_original>
// kernel: tpu_custom_call.1
$region0: #{tpu_custom_call.1}
  #allocation0 [shape = 'u32[]', space=smem, size = 0x4, offset = 0x4, fixed_abs, tag = 'smem constant byte address 0x4 - core index']
  #allocation1 [shape = 'u32[72,128]{1,0:T(1,128)}', space=vmem, size = 0x9000, scoped, tag = 'internal scratch']
  %s0 = inlined_call_operand.vmem [shape: f32[2,16,16,4], index: 0, kind: input, shape index: {}]
  %s1 = inlined_call_operand.vmem [shape: f32[2,16,16,4], index: 1, kind: output, shape index: {0}]
  %s2 = inlined_call_operand.hbm [shape: f32[1,1,1,4], index: 2, kind: output, shape index: {1}]
  %s3 = inlined_call_operand.hbm [shape: f32[1,1,1,4], index: 3, kind: output, shape index: {2}]
  %4 = xla_tuple %s1, %s2, %s3
  %s5 = sld [smem:[#allocation0]]
  $region34: #{tpu_custom_call.1} parent=0
    _
  %s7 = ssub.s32 1, %s5
  %s8 = scalar_select 0, %s7, %s5
  $region1: #{tpu_custom_call.1} parent=0
    #allocation2 [shape = 'u8[512]{0}', space=vmem, size = 0x400, scoped, tag = 'output window, operand 1, single buffered']
    #allocation3 [shape = 's32[1]{0}', space=sflag, size = 0x4, scoped, tag = 'scoped memory for tpu_custom_call.1']
    #allocation4 [shape = 'u8[512]{0}', space=vmem, size = 0x400, scoped, tag = 'output window, operand 2, single buffered']
    #allocation5 [shape = 's32[1]{0}', space=sflag, size = 0x4, scoped, tag = 'scoped memory for tpu_custom_call.1']
    %9 = vsyncpa [#allocation3], 0
    %10 = vsyncpa [#allocation5], 0
    // Predicated region
    $region2: #{tpu_custom_call.1} parent=1 // pred_check
      _
    $region3: #{tpu_custom_call.1} parent=1 // pred_check_branch
      %12 = sbr.rel (0) target = $region5
    $region4: #{tpu_custom_call.1} parent=1 // pred_region
      _
    $region5: #{tpu_custom_call.1} parent=1 // pred_fallthru
      _
    %v13 = vld [vmem:[%s0] sm:$0xff]
    %v14 = vld [vmem:[%s0 + $0x8] sm:$0xff]
    %v15 = vld [vmem:[%s0 + $0x10] sm:$0xff]
    %v16 = vld [vmem:[%s0 + $0x18] sm:$0xff]
    %v17 = vld [vmem:[%s0 + $0x20] sm:$0xff]
    %v18 = vld [vmem:[%s0 + $0x28] sm:$0xff]
    %v19 = vld [vmem:[%s0 + $0x30] sm:$0xff]
    %v20 = vld [vmem:[%s0 + $0x38] sm:$0xff]
    %v21 = vld [vmem:[%s0 + $0x40] sm:$0xff]
    %v22 = vld [vmem:[%s0 + $0x48] sm:$0xff]
    %v23 = vld [vmem:[%s0 + $0x50] sm:$0xff]
    %v24 = vld [vmem:[%s0 + $0x58] sm:$0xff]
    %v25 = vld [vmem:[%s0 + $0x60] sm:$0xff]
    %v26 = vld [vmem:[%s0 + $0x68] sm:$0xff]
    %v27 = vld [vmem:[%s0 + $0x70] sm:$0xff]
    %v28 = vld [vmem:[%s0 + $0x78] sm:$0xff]
    %v29 = vld [vmem:[%s0 + $0x80] sm:$0xff]
    %v30 = vld [vmem:[%s0 + $0x88] sm:$0xff]
    %v31 = vld [vmem:[%s0 + $0x90] sm:$0xff]
    %v32 = vld [vmem:[%s0 + $0x98] sm:$0xff]
    %v33 = vld [vmem:[%s0 + $0xa0] sm:$0xff]
    %v34 = vld [vmem:[%s0 + $0xa8] sm:$0xff]
    %v35 = vld [vmem:[%s0 + $0xb0] sm:$0xff]
    %v36 = vld [vmem:[%s0 + $0xb8] sm:$0xff]
    %v37 = vld [vmem:[%s0 + $0xc0] sm:$0xff]
    %v38 = vld [vmem:[%s0 + $0xc8] sm:$0xff]
    %v39 = vld [vmem:[%s0 + $0xd0] sm:$0xff]
    %v40 = vld [vmem:[%s0 + $0xd8] sm:$0xff]
    %v41 = vld [vmem:[%s0 + $0xe0] sm:$0xff]
    %v42 = vld [vmem:[%s0 + $0xe8] sm:$0xff]
    %v43 = vld [vmem:[%s0 + $0xf0] sm:$0xff]
    %v44 = vld [vmem:[%s0 + $0xf8] sm:$0xff]
    %v45 = vld [vmem:[%s0 + $0x100] sm:$0xff]
    %v46 = vld [vmem:[%s0 + $0x108] sm:$0xff]
    %v47 = vld [vmem:[%s0 + $0x110] sm:$0xff]
    %v48 = vld [vmem:[%s0 + $0x118] sm:$0xff]
    %v49 = vld [vmem:[%s0 + $0x120] sm:$0xff]
    %v50 = vld [vmem:[%s0 + $0x128] sm:$0xff]
    %v51 = vld [vmem:[%s0 + $0x130] sm:$0xff]
    %v52 = vld [vmem:[%s0 + $0x138] sm:$0xff]
    %v53 = vld [vmem:[%s0 + $0x140] sm:$0xff]
    %v54 = vld [vmem:[%s0 + $0x148] sm:$0xff]
    %v55 = vld [vmem:[%s0 + $0x150] sm:$0xff]
    %v56 = vld [vmem:[%s0 + $0x158] sm:$0xff]
    %v57 = vld [vmem:[%s0 + $0x160] sm:$0xff]
    %v58 = vld [vmem:[%s0 + $0x168] sm:$0xff]
    %v59 = vld [vmem:[%s0 + $0x170] sm:$0xff]
    %v60 = vld [vmem:[%s0 + $0x178] sm:$0xff]
    %v61 = vld [vmem:[%s0 + $0x180] sm:$0xff]
    %v62 = vld [vmem:[%s0 + $0x188] sm:$0xff]
    %v63 = vld [vmem:[%s0 + $0x190] sm:$0xff]
    %v64 = vld [vmem:[%s0 + $0x198] sm:$0xff]
    %v65 = vld [vmem:[%s0 + $0x1a0] sm:$0xff]
    %v66 = vld [vmem:[%s0 + $0x1a8] sm:$0xff]
    %v67 = vld [vmem:[%s0 + $0x1b0] sm:$0xff]
    %v68 = vld [vmem:[%s0 + $0x1b8] sm:$0xff]
    %v69 = vld [vmem:[%s0 + $0x1c0] sm:$0xff]
    %v70 = vld [vmem:[%s0 + $0x1c8] sm:$0xff]
    %v71 = vld [vmem:[%s0 + $0x1d0] sm:$0xff]
    %v72 = vld [vmem:[%s0 + $0x1d8] sm:$0xff]
    %v73 = vld [vmem:[%s0 + $0x1e0] sm:$0xff]
    %v74 = vld [vmem:[%s0 + $0x1e8] sm:$0xff]
    %v75 = vld [vmem:[%s0 + $0x1f0] sm:$0xff]
    %v76 = vld [vmem:[%s0 + $0x1f8] sm:$0xff]
    %v77 = vrot.slane %v13, 7
    %v78 = vrot.slane %v15, 7
    %v79 = vrot.slane %v17, 7
    %v80 = vrot.slane %v19, 7
    %v81 = vrot.slane %v21, 7
    %v82 = vrot.slane %v23, 7
    %v83 = vrot.slane %v25, 7
    %v84 = vrot.slane %v27, 7
    %v85 = vrot.slane %v29, 7
    %v86 = vrot.slane %v31, 7
    %v87 = vrot.slane %v33, 7
    %v88 = vrot.slane %v35, 7
    %v89 = vrot.slane %v37, 7
    %v90 = vrot.slane %v39, 7
    %v91 = vrot.slane %v41, 7
    %v92 = vrot.slane %v43, 7
    %v93 = vrot.slane %v45, 7
    %v94 = vrot.slane %v47, 7
    %v95 = vrot.slane %v49, 7
    %v96 = vrot.slane %v51, 7
    %v97 = vrot.slane %v53, 7
    %v98 = vrot.slane %v55, 7
    %v99 = vrot.slane %v57, 7
    %v100 = vrot.slane %v59, 7
    %v101 = vrot.slane %v61, 7
    %v102 = vrot.slane %v63, 7
    %v103 = vrot.slane %v65, 7
    %v104 = vrot.slane %v67, 7
    %v105 = vrot.slane %v69, 7
    %v106 = vrot.slane %v71, 7
    %v107 = vrot.slane %v73, 7
    %v108 = vrot.slane %v75, 7
    %v109 = vrot.slane %v14, 7
    %v110 = vrot.slane %v16, 7
    %v111 = vrot.slane %v18, 7
    %v112 = vrot.slane %v20, 7
    %v113 = vrot.slane %v22, 7
    %v114 = vrot.slane %v24, 7
    %v115 = vrot.slane %v26, 7
    %v116 = vrot.slane %v28, 7
    %v117 = vrot.slane %v30, 7
    %v118 = vrot.slane %v32, 7
    %v119 = vrot.slane %v34, 7
    %v120 = vrot.slane %v36, 7
    %v121 = vrot.slane %v38, 7
    %v122 = vrot.slane %v40, 7
    %v123 = vrot.slane %v42, 7
    %v124 = vrot.slane %v44, 7
    %v125 = vrot.slane %v46, 7
    %v126 = vrot.slane %v48, 7
    %v127 = vrot.slane %v50, 7
    %v128 = vrot.slane %v52, 7
    %v129 = vrot.slane %v54, 7
    %v130 = vrot.slane %v56, 7
    %v131 = vrot.slane %v58, 7
    %v132 = vrot.slane %v60, 7
    %v133 = vrot.slane %v62, 7
    %v134 = vrot.slane %v64, 7
    %v135 = vrot.slane %v66, 7
    %v136 = vrot.slane %v68, 7
    %v137 = vrot.slane %v70, 7
    %v138 = vrot.slane %v72, 7
    %v139 = vrot.slane %v74, 7
    %v140 = vrot.slane %v76, 7
    %v141 = vlaneseq
    %v142 = vshrl.u32 %v141, 7
    %vm143 = vcmp.lt.s32.totalorder %v142, 1
    %v144 = vsel %vm143, %v77, %v109
    %v145 = vsel %vm143, %v78, %v110
    %v146 = vsel %vm143, %v79, %v111
    %v147 = vsel %vm143, %v80, %v112
    %v148 = vsel %vm143, %v81, %v113
    %v149 = vsel %vm143, %v82, %v114
    %v150 = vsel %vm143, %v83, %v115
    %v151 = vsel %vm143, %v84, %v116
    %v152 = vsel %vm143, %v85, %v117
    %v153 = vsel %vm143, %v86, %v118
    %v154 = vsel %vm143, %v87, %v119
    %v155 = vsel %vm143, %v88, %v120
    %v156 = vsel %vm143, %v89, %v121
    %v157 = vsel %vm143, %v90, %v122
    %v158 = vsel %vm143, %v91, %v123
    %v159 = vsel %vm143, %v92, %v124
    %v160 = vsel %vm143, %v93, %v125
    %v161 = vsel %vm143, %v94, %v126
    %v162 = vsel %vm143, %v95, %v127
    %v163 = vsel %vm143, %v96, %v128
    %v164 = vsel %vm143, %v97, %v129
    %v165 = vsel %vm143, %v98, %v130
    %v166 = vsel %vm143, %v99, %v131
    %v167 = vsel %vm143, %v100, %v132
    %v168 = vsel %vm143, %v101, %v133
    %v169 = vsel %vm143, %v102, %v134
    %v170 = vsel %vm143, %v103, %v135
    %v171 = vsel %vm143, %v104, %v136
    %v172 = vsel %vm143, %v105, %v137
    %v173 = vsel %vm143, %v106, %v138
    %v174 = vsel %vm143, %v107, %v139
    %v175 = vsel %vm143, %v108, %v140
    %v176 = vsel %vm143, %v109, %v77
    %v177 = vsel %vm143, %v110, %v78
    %v178 = vsel %vm143, %v111, %v79
    %v179 = vsel %vm143, %v112, %v80
    %v180 = vsel %vm143, %v113, %v81
    %v181 = vsel %vm143, %v114, %v82
    %v182 = vsel %vm143, %v115, %v83
    %v183 = vsel %vm143, %v116, %v84
    %v184 = vsel %vm143, %v117, %v85
    %v185 = vsel %vm143, %v118, %v86
    %v186 = vsel %vm143, %v119, %v87
    %v187 = vsel %vm143, %v120, %v88
    %v188 = vsel %vm143, %v121, %v89
    %v189 = vsel %vm143, %v122, %v90
    %v190 = vsel %vm143, %v123, %v91
    %v191 = vsel %vm143, %v124, %v92
    %v192 = vsel %vm143, %v125, %v93
    %v193 = vsel %vm143, %v126, %v94
    %v194 = vsel %vm143, %v127, %v95
    %v195 = vsel %vm143, %v128, %v96
    %v196 = vsel %vm143, %v129, %v97
    %v197 = vsel %vm143, %v130, %v98
    %v198 = vsel %vm143, %v131, %v99
    %v199 = vsel %vm143, %v132, %v100
    %v200 = vsel %vm143, %v133, %v101
    %v201 = vsel %vm143, %v134, %v102
    %v202 = vsel %vm143, %v135, %v103
    %v203 = vsel %vm143, %v136, %v104
    %v204 = vsel %vm143, %v137, %v105
    %v205 = vsel %vm143, %v138, %v106
    %v206 = vsel %vm143, %v139, %v107
    %v207 = vsel %vm143, %v140, %v108
    %v208 = vadd.s32 %v142, 8
    %v209 = vadd.s32 %v142, 4294967295
    %v210 = vadd.s32 %v208, 4294967295
    %vm211 = vcmp.ge.s32.totalorder %v209, 0
    %vm212 = vcmp.ge.s32.totalorder %v210, 0
    %vm213 = vcmp.lt.s32.totalorder %v209, 16
    %vm214 = vcmp.lt.s32.totalorder %v210, 16
    %vm215 = vmand %vm211, %vm213
    %vm216 = vmand %vm212, %vm214
    %v217 = vsel %vm215, 1, 0
    %v218 = vsel %vm216, 1, 0
    %vm219 = vcmp.eq.s32.totalorder %v217, 1
    %vm220 = vcmp.eq.s32.totalorder %v218, 1
    %v221 = vsel %vm219, %v176, -inf
    %v222 = vsel %vm220, %v144, -inf
    %v223 = vsel %vm219, %v177, -inf
    %v224 = vsel %vm220, %v145, -inf
    %v225 = vsel %vm219, %v178, -inf
    %v226 = vsel %vm220, %v146, -inf
    %v227 = vsel %vm219, %v179, -inf
    %v228 = vsel %vm220, %v147, -inf
    %v229 = vsel %vm219, %v180, -inf
    %v230 = vsel %vm220, %v148, -inf
    %v231 = vsel %vm219, %v181, -inf
    %v232 = vsel %vm220, %v149, -inf
    %v233 = vsel %vm219, %v182, -inf
    %v234 = vsel %vm220, %v150, -inf
    %v235 = vsel %vm219, %v183, -inf
    %v236 = vsel %vm220, %v151, -inf
    %v237 = vsel %vm219, %v184, -inf
    %v238 = vsel %vm220, %v152, -inf
    %v239 = vsel %vm219, %v185, -inf
    %v240 = vsel %vm220, %v153, -inf
    %v241 = vsel %vm219, %v186, -inf
    %v242 = vsel %vm220, %v154, -inf
    %v243 = vsel %vm219, %v187, -inf
    %v244 = vsel %vm220, %v155, -inf
    %v245 = vsel %vm219, %v188, -inf
    %v246 = vsel %vm220, %v156, -inf
    %v247 = vsel %vm219, %v189, -inf
    %v248 = vsel %vm220, %v157, -inf
    %v249 = vsel %vm219, %v190, -inf
    %v250 = vsel %vm220, %v158, -inf
    %v251 = vsel %vm219, %v191, -inf
    %v252 = vsel %vm220, %v159, -inf
    %v253 = vsel %vm219, %v192, -inf
    %v254 = vsel %vm220, %v160, -inf
    %v255 = vsel %vm219, %v193, -inf
    %v256 = vsel %vm220, %v161, -inf
    %v257 = vsel %vm219, %v194, -inf
    %v258 = vsel %vm220, %v162, -inf
    %v259 = vsel %vm219, %v195, -inf
    %v260 = vsel %vm220, %v163, -inf
    %v261 = vsel %vm219, %v196, -inf
    %v262 = vsel %vm220, %v164, -inf
    %v263 = vsel %vm219, %v197, -inf
    %v264 = vsel %vm220, %v165, -inf
    %v265 = vsel %vm219, %v198, -inf
    %v266 = vsel %vm220, %v166, -inf
    %v267 = vsel %vm219, %v199, -inf
    %v268 = vsel %vm220, %v167, -inf
    %v269 = vsel %vm219, %v200, -inf
    %v270 = vsel %vm220, %v168, -inf
    %v271 = vsel %vm219, %v201, -inf
    %v272 = vsel %vm220, %v169, -inf
    %v273 = vsel %vm219, %v202, -inf
    %v274 = vsel %vm220, %v170, -inf
    %v275 = vsel %vm219, %v203, -inf
    %v276 = vsel %vm220, %v171, -inf
    %v277 = vsel %vm219, %v204, -inf
    %v278 = vsel %vm220, %v172, -inf
    %v279 = vsel %vm219, %v205, -inf
    %v280 = vsel %vm220, %v173, -inf
    %v281 = vsel %vm219, %v206, -inf
    %v282 = vsel %vm220, %v174, -inf
    %v283 = vsel %vm219, %v207, -inf
    %v284 = vsel %vm220, %v175, -inf
    %v285 = vmax.f32 %v221, %v13
    %v286 = vmax.f32 %v222, %v14
    %v287 = vmax.f32 %v223, %v15
    %v288 = vmax.f32 %v224, %v16
    %v289 = vmax.f32 %v225, %v17
    %v290 = vmax.f32 %v226, %v18
    %v291 = vmax.f32 %v227, %v19
    %v292 = vmax.f32 %v228, %v20
    %v293 = vmax.f32 %v229, %v21
    %v294 = vmax.f32 %v230, %v22
    %v295 = vmax.f32 %v231, %v23
    %v296 = vmax.f32 %v232, %v24
    %v297 = vmax.f32 %v233, %v25
    %v298 = vmax.f32 %v234, %v26
    %v299 = vmax.f32 %v235, %v27
    %v300 = vmax.f32 %v236, %v28
    %v301 = vmax.f32 %v237, %v29
    %v302 = vmax.f32 %v238, %v30
    %v303 = vmax.f32 %v239, %v31
    %v304 = vmax.f32 %v240, %v32
    %v305 = vmax.f32 %v241, %v33
    %v306 = vmax.f32 %v242, %v34
    %v307 = vmax.f32 %v243, %v35
    %v308 = vmax.f32 %v244, %v36
    %v309 = vmax.f32 %v245, %v37
    %v310 = vmax.f32 %v246, %v38
    %v311 = vmax.f32 %v247, %v39
    %v312 = vmax.f32 %v248, %v40
    %v313 = vmax.f32 %v249, %v41
    %v314 = vmax.f32 %v250, %v42
    %v315 = vmax.f32 %v251, %v43
    %v316 = vmax.f32 %v252, %v44
    %v317 = vmax.f32 %v253, %v45
    %v318 = vmax.f32 %v254, %v46
    %v319 = vmax.f32 %v255, %v47
    %v320 = vmax.f32 %v256, %v48
    %v321 = vmax.f32 %v257, %v49
    %v322 = vmax.f32 %v258, %v50
    %v323 = vmax.f32 %v259, %v51
    %v324 = vmax.f32 %v260, %v52
    %v325 = vmax.f32 %v261, %v53
    %v326 = vmax.f32 %v262, %v54
    %v327 = vmax.f32 %v263, %v55
    %v328 = vmax.f32 %v264, %v56
    %v329 = vmax.f32 %v265, %v57
    %v330 = vmax.f32 %v266, %v58
    %v331 = vmax.f32 %v267, %v59
    %v332 = vmax.f32 %v268, %v60
    %v333 = vmax.f32 %v269, %v61
    %v334 = vmax.f32 %v270, %v62
    %v335 = vmax.f32 %v271, %v63
    %v336 = vmax.f32 %v272, %v64
    %v337 = vmax.f32 %v273, %v65
    %v338 = vmax.f32 %v274, %v66
    %v339 = vmax.f32 %v275, %v67
    %v340 = vmax.f32 %v276, %v68
    %v341 = vmax.f32 %v277, %v69
    %v342 = vmax.f32 %v278, %v70
    %v343 = vmax.f32 %v279, %v71
    %v344 = vmax.f32 %v280, %v72
    %v345 = vmax.f32 %v281, %v73
    %v346 = vmax.f32 %v282, %v74
    %v347 = vmax.f32 %v283, %v75
    %v348 = vmax.f32 %v284, %v76
    %v349 = vrot.slane %v13, 1
    %v350 = vrot.slane %v15, 1
    %v351 = vrot.slane %v17, 1
    %v352 = vrot.slane %v19, 1
    %v353 = vrot.slane %v21, 1
    %v354 = vrot.slane %v23, 1
    %v355 = vrot.slane %v25, 1
    %v356 = vrot.slane %v27, 1
    %v357 = vrot.slane %v29, 1
    %v358 = vrot.slane %v31, 1
    %v359 = vrot.slane %v33, 1
    %v360 = vrot.slane %v35, 1
    %v361 = vrot.slane %v37, 1
    %v362 = vrot.slane %v39, 1
    %v363 = vrot.slane %v41, 1
    %v364 = vrot.slane %v43, 1
    %v365 = vrot.slane %v45, 1
    %v366 = vrot.slane %v47, 1
    %v367 = vrot.slane %v49, 1
    %v368 = vrot.slane %v51, 1
    %v369 = vrot.slane %v53, 1
    %v370 = vrot.slane %v55, 1
    %v371 = vrot.slane %v57, 1
    %v372 = vrot.slane %v59, 1
    %v373 = vrot.slane %v61, 1
    %v374 = vrot.slane %v63, 1
    %v375 = vrot.slane %v65, 1
    %v376 = vrot.slane %v67, 1
    %v377 = vrot.slane %v69, 1
    %v378 = vrot.slane %v71, 1
    %v379 = vrot.slane %v73, 1
    %v380 = vrot.slane %v75, 1
    %v381 = vrot.slane %v14, 1
    %v382 = vrot.slane %v16, 1
    %v383 = vrot.slane %v18, 1
    %v384 = vrot.slane %v20, 1
    %v385 = vrot.slane %v22, 1
    %v386 = vrot.slane %v24, 1
    %v387 = vrot.slane %v26, 1
    %v388 = vrot.slane %v28, 1
    %v389 = vrot.slane %v30, 1
    %v390 = vrot.slane %v32, 1
    %v391 = vrot.slane %v34, 1
    %v392 = vrot.slane %v36, 1
    %v393 = vrot.slane %v38, 1
    %v394 = vrot.slane %v40, 1
    %v395 = vrot.slane %v42, 1
    %v396 = vrot.slane %v44, 1
    %v397 = vrot.slane %v46, 1
    %v398 = vrot.slane %v48, 1
    %v399 = vrot.slane %v50, 1
    %v400 = vrot.slane %v52, 1
    %v401 = vrot.slane %v54, 1
    %v402 = vrot.slane %v56, 1
    %v403 = vrot.slane %v58, 1
    %v404 = vrot.slane %v60, 1
    %v405 = vrot.slane %v62, 1
    %v406 = vrot.slane %v64, 1
    %v407 = vrot.slane %v66, 1
    %v408 = vrot.slane %v68, 1
    %v409 = vrot.slane %v70, 1
    %v410 = vrot.slane %v72, 1
    %v411 = vrot.slane %v74, 1
    %v412 = vrot.slane %v76, 1
    %vm413 = vcmp.lt.s32.totalorder %v142, 7
    %v414 = vsel %vm413, %v349, %v381
    %v415 = vsel %vm413, %v350, %v382
    %v416 = vsel %vm413, %v351, %v383
    %v417 = vsel %vm413, %v352, %v384
    %v418 = vsel %vm413, %v353, %v385
    %v419 = vsel %vm413, %v354, %v386
    %v420 = vsel %vm413, %v355, %v387
    %v421 = vsel %vm413, %v356, %v388
    %v422 = vsel %vm413, %v357, %v389
    %v423 = vsel %vm413, %v358, %v390
    %v424 = vsel %vm413, %v359, %v391
    %v425 = vsel %vm413, %v360, %v392
    %v426 = vsel %vm413, %v361, %v393
    %v427 = vsel %vm413, %v362, %v394
    %v428 = vsel %vm413, %v363, %v395
    %v429 = vsel %vm413, %v364, %v396
    %v430 = vsel %vm413, %v365, %v397
    %v431 = vsel %vm413, %v366, %v398
    %v432 = vsel %vm413, %v367, %v399
    %v433 = vsel %vm413, %v368, %v400
    %v434 = vsel %vm413, %v369, %v401
    %v435 = vsel %vm413, %v370, %v402
    %v436 = vsel %vm413, %v371, %v403
    %v437 = vsel %vm413, %v372, %v404
    %v438 = vsel %vm413, %v373, %v405
    %v439 = vsel %vm413, %v374, %v406
    %v440 = vsel %vm413, %v375, %v407
    %v441 = vsel %vm413, %v376, %v408
    %v442 = vsel %vm413, %v377, %v409
    %v443 = vsel %vm413, %v378, %v410
    %v444 = vsel %vm413, %v379, %v411
    %v445 = vsel %vm413, %v380, %v412
    %v446 = vsel %vm413, %v381, %v349
    %v447 = vsel %vm413, %v382, %v350
    %v448 = vsel %vm413, %v383, %v351
    %v449 = vsel %vm413, %v384, %v352
    %v450 = vsel %vm413, %v385, %v353
    %v451 = vsel %vm413, %v386, %v354
    %v452 = vsel %vm413, %v387, %v355
    %v453 = vsel %vm413, %v388, %v356
    %v454 = vsel %vm413, %v389, %v357
    %v455 = vsel %vm413, %v390, %v358
    %v456 = vsel %vm413, %v391, %v359
    %v457 = vsel %vm413, %v392, %v360
    %v458 = vsel %vm413, %v393, %v361
    %v459 = vsel %vm413, %v394, %v362
    %v460 = vsel %vm413, %v395, %v363
    %v461 = vsel %vm413, %v396, %v364
    %v462 = vsel %vm413, %v397, %v365
    %v463 = vsel %vm413, %v398, %v366
    %v464 = vsel %vm413, %v399, %v367
    %v465 = vsel %vm413, %v400, %v368
    %v466 = vsel %vm413, %v401, %v369
    %v467 = vsel %vm413, %v402, %v370
    %v468 = vsel %vm413, %v403, %v371
    %v469 = vsel %vm413, %v404, %v372
    %v470 = vsel %vm413, %v405, %v373
    %v471 = vsel %vm413, %v406, %v374
    %v472 = vsel %vm413, %v407, %v375
    %v473 = vsel %vm413, %v408, %v376
    %v474 = vsel %vm413, %v409, %v377
    %v475 = vsel %vm413, %v410, %v378
    %v476 = vsel %vm413, %v411, %v379
    %v477 = vsel %vm413, %v412, %v380
    %v478 = vadd.s32 %v142, 1
    %v479 = vadd.s32 %v208, 1
    %vm480 = vcmp.ge.s32.totalorder %v478, 0
    %vm481 = vcmp.ge.s32.totalorder %v479, 0
    %vm482 = vcmp.lt.s32.totalorder %v478, 16
    %vm483 = vcmp.lt.s32.totalorder %v479, 16
    %vm484 = vmand %vm480, %vm482
    %vm485 = vmand %vm481, %vm483
    %v486 = vsel %vm484, 1, 0
    %v487 = vsel %vm485, 1, 0
    %vm488 = vcmp.eq.s32.totalorder %v486, 1
    %vm489 = vcmp.eq.s32.totalorder %v487, 1
    %v490 = vsel %vm488, %v414, -inf
    %v491 = vsel %vm489, %v446, -inf
    %v492 = vsel %vm488, %v415, -inf
    %v493 = vsel %vm489, %v447, -inf
    %v494 = vsel %vm488, %v416, -inf
    %v495 = vsel %vm489, %v448, -inf
    %v496 = vsel %vm488, %v417, -inf
    %v497 = vsel %vm489, %v449, -inf
    %v498 = vsel %vm488, %v418, -inf
    %v499 = vsel %vm489, %v450, -inf
    %v500 = vsel %vm488, %v419, -inf
    %v501 = vsel %vm489, %v451, -inf
    %v502 = vsel %vm488, %v420, -inf
    %v503 = vsel %vm489, %v452, -inf
    %v504 = vsel %vm488, %v421, -inf
    %v505 = vsel %vm489, %v453, -inf
    %v506 = vsel %vm488, %v422, -inf
    %v507 = vsel %vm489, %v454, -inf
    %v508 = vsel %vm488, %v423, -inf
    %v509 = vsel %vm489, %v455, -inf
    %v510 = vsel %vm488, %v424, -inf
    %v511 = vsel %vm489, %v456, -inf
    %v512 = vsel %vm488, %v425, -inf
    %v513 = vsel %vm489, %v457, -inf
    %v514 = vsel %vm488, %v426, -inf
    %v515 = vsel %vm489, %v458, -inf
    %v516 = vsel %vm488, %v427, -inf
    %v517 = vsel %vm489, %v459, -inf
    %v518 = vsel %vm488, %v428, -inf
    %v519 = vsel %vm489, %v460, -inf
    %v520 = vsel %vm488, %v429, -inf
    %v521 = vsel %vm489, %v461, -inf
    %v522 = vsel %vm488, %v430, -inf
    %v523 = vsel %vm489, %v462, -inf
    %v524 = vsel %vm488, %v431, -inf
    %v525 = vsel %vm489, %v463, -inf
    %v526 = vsel %vm488, %v432, -inf
    %v527 = vsel %vm489, %v464, -inf
    %v528 = vsel %vm488, %v433, -inf
    %v529 = vsel %vm489, %v465, -inf
    %v530 = vsel %vm488, %v434, -inf
    %v531 = vsel %vm489, %v466, -inf
    %v532 = vsel %vm488, %v435, -inf
    %v533 = vsel %vm489, %v467, -inf
    %v534 = vsel %vm488, %v436, -inf
    %v535 = vsel %vm489, %v468, -inf
    %v536 = vsel %vm488, %v437, -inf
    %v537 = vsel %vm489, %v469, -inf
    %v538 = vsel %vm488, %v438, -inf
    %v539 = vsel %vm489, %v470, -inf
    %v540 = vsel %vm488, %v439, -inf
    %v541 = vsel %vm489, %v471, -inf
    %v542 = vsel %vm488, %v440, -inf
    %v543 = vsel %vm489, %v472, -inf
    %v544 = vsel %vm488, %v441, -inf
    %v545 = vsel %vm489, %v473, -inf
    %v546 = vsel %vm488, %v442, -inf
    %v547 = vsel %vm489, %v474, -inf
    %v548 = vsel %vm488, %v443, -inf
    %v549 = vsel %vm489, %v475, -inf
    %v550 = vsel %vm488, %v444, -inf
    %v551 = vsel %vm489, %v476, -inf
    %v552 = vsel %vm488, %v445, -inf
    %v553 = vsel %vm489, %v477, -inf
    %v554 = vmax.f32 %v285, %v490
    %v555 = vmax.f32 %v286, %v491
    %v556 = vmax.f32 %v287, %v492
    %v557 = vmax.f32 %v288, %v493
    %v558 = vmax.f32 %v289, %v494
    %v559 = vmax.f32 %v290, %v495
    %v560 = vmax.f32 %v291, %v496
    %v561 = vmax.f32 %v292, %v497
    %v562 = vmax.f32 %v293, %v498
    %v563 = vmax.f32 %v294, %v499
    %v564 = vmax.f32 %v295, %v500
    %v565 = vmax.f32 %v296, %v501
    %v566 = vmax.f32 %v297, %v502
    %v567 = vmax.f32 %v298, %v503
    %v568 = vmax.f32 %v299, %v504
    %v569 = vmax.f32 %v300, %v505
    %v570 = vmax.f32 %v301, %v506
    %v571 = vmax.f32 %v302, %v507
    %v572 = vmax.f32 %v303, %v508
    %v573 = vmax.f32 %v304, %v509
    %v574 = vmax.f32 %v305, %v510
    %v575 = vmax.f32 %v306, %v511
    %v576 = vmax.f32 %v307, %v512
    %v577 = vmax.f32 %v308, %v513
    %v578 = vmax.f32 %v309, %v514
    %v579 = vmax.f32 %v310, %v515
    %v580 = vmax.f32 %v311, %v516
    %v581 = vmax.f32 %v312, %v517
    %v582 = vmax.f32 %v313, %v518
    %v583 = vmax.f32 %v314, %v519
    %v584 = vmax.f32 %v315, %v520
    %v585 = vmax.f32 %v316, %v521
    %v586 = vmax.f32 %v317, %v522
    %v587 = vmax.f32 %v318, %v523
    %v588 = vmax.f32 %v319, %v524
    %v589 = vmax.f32 %v320, %v525
    %v590 = vmax.f32 %v321, %v526
    %v591 = vmax.f32 %v322, %v527
    %v592 = vmax.f32 %v323, %v528
    %v593 = vmax.f32 %v324, %v529
    %v594 = vmax.f32 %v325, %v530
    %v595 = vmax.f32 %v326, %v531
    %v596 = vmax.f32 %v327, %v532
    %v597 = vmax.f32 %v328, %v533
    %v598 = vmax.f32 %v329, %v534
    %v599 = vmax.f32 %v330, %v535
    %v600 = vmax.f32 %v331, %v536
    %v601 = vmax.f32 %v332, %v537
    %v602 = vmax.f32 %v333, %v538
    %v603 = vmax.f32 %v334, %v539
    %v604 = vmax.f32 %v335, %v540
    %v605 = vmax.f32 %v336, %v541
    %v606 = vmax.f32 %v337, %v542
    %v607 = vmax.f32 %v338, %v543
    %v608 = vmax.f32 %v339, %v544
    %v609 = vmax.f32 %v340, %v545
    %v610 = vmax.f32 %v341, %v546
    %v611 = vmax.f32 %v342, %v547
    %v612 = vmax.f32 %v343, %v548
    %v613 = vmax.f32 %v344, %v549
    %v614 = vmax.f32 %v345, %v550
    %v615 = vmax.f32 %v346, %v551
    %v616 = vmax.f32 %v347, %v552
    %v617 = vmax.f32 %v348, %v553
    %v618 = vmax.f32 %v554, %v556
    %v619 = vmax.f32 %v555, %v557
    %v620 = vmax.f32 %v556, %v558
    %v621 = vmax.f32 %v557, %v559
    %v622 = vmax.f32 %v558, %v560
    %v623 = vmax.f32 %v559, %v561
    %v624 = vmax.f32 %v560, %v562
    %v625 = vmax.f32 %v561, %v563
    %v626 = vmax.f32 %v562, %v564
    %v627 = vmax.f32 %v563, %v565
    %v628 = vmax.f32 %v564, %v566
    %v629 = vmax.f32 %v565, %v567
    %v630 = vmax.f32 %v566, %v568
    %v631 = vmax.f32 %v567, %v569
    %v632 = vmax.f32 %v568, %v570
    %v633 = vmax.f32 %v569, %v571
    %v634 = vmax.f32 %v570, %v572
    %v635 = vmax.f32 %v571, %v573
    %v636 = vmax.f32 %v572, %v574
    %v637 = vmax.f32 %v573, %v575
    %v638 = vmax.f32 %v574, %v576
    %v639 = vmax.f32 %v575, %v577
    %v640 = vmax.f32 %v576, %v578
    %v641 = vmax.f32 %v577, %v579
    %v642 = vmax.f32 %v578, %v580
    %v643 = vmax.f32 %v579, %v581
    %v644 = vmax.f32 %v580, %v582
    %v645 = vmax.f32 %v581, %v583
    %v646 = vmax.f32 %v582, %v584
    %v647 = vmax.f32 %v583, %v585
    %v648 = vmax.f32 %v586, %v588
    %v649 = vmax.f32 %v587, %v589
    %v650 = vmax.f32 %v588, %v590
    %v651 = vmax.f32 %v589, %v591
    %v652 = vmax.f32 %v590, %v592
    %v653 = vmax.f32 %v591, %v593
    %v654 = vmax.f32 %v592, %v594
    %v655 = vmax.f32 %v593, %v595
    %v656 = vmax.f32 %v594, %v596
    %v657 = vmax.f32 %v595, %v597
    %v658 = vmax.f32 %v596, %v598
    %v659 = vmax.f32 %v597, %v599
    %v660 = vmax.f32 %v598, %v600
    %v661 = vmax.f32 %v599, %v601
    %v662 = vmax.f32 %v600, %v602
    %v663 = vmax.f32 %v601, %v603
    %v664 = vmax.f32 %v602, %v604
    %v665 = vmax.f32 %v603, %v605
    %v666 = vmax.f32 %v604, %v606
    %v667 = vmax.f32 %v605, %v607
    %v668 = vmax.f32 %v606, %v608
    %v669 = vmax.f32 %v607, %v609
    %v670 = vmax.f32 %v608, %v610
    %v671 = vmax.f32 %v609, %v611
    %v672 = vmax.f32 %v610, %v612
    %v673 = vmax.f32 %v611, %v613
    %v674 = vmax.f32 %v612, %v614
    %v675 = vmax.f32 %v613, %v615
    %v676 = vmax.f32 %v614, %v616
    %v677 = vmax.f32 %v615, %v617
    %v678 = vmax.f32 %v618, %v558
    %v679 = vmax.f32 %v619, %v559
    %v680 = vmax.f32 %v620, %v560
    %v681 = vmax.f32 %v621, %v561
    %v682 = vmax.f32 %v622, %v562
    %v683 = vmax.f32 %v623, %v563
    %v684 = vmax.f32 %v624, %v564
    %v685 = vmax.f32 %v625, %v565
    %v686 = vmax.f32 %v626, %v566
    %v687 = vmax.f32 %v627, %v567
    %v688 = vmax.f32 %v628, %v568
    %v689 = vmax.f32 %v629, %v569
    %v690 = vmax.f32 %v630, %v570
    %v691 = vmax.f32 %v631, %v571
    %v692 = vmax.f32 %v632, %v572
    %v693 = vmax.f32 %v633, %v573
    %v694 = vmax.f32 %v634, %v574
    %v695 = vmax.f32 %v635, %v575
    %v696 = vmax.f32 %v636, %v576
    %v697 = vmax.f32 %v637, %v577
    %v698 = vmax.f32 %v638, %v578
    %v699 = vmax.f32 %v639, %v579
    %v700 = vmax.f32 %v640, %v580
    %v701 = vmax.f32 %v641, %v581
    %v702 = vmax.f32 %v642, %v582
    %v703 = vmax.f32 %v643, %v583
    %v704 = vmax.f32 %v644, %v584
    %v705 = vmax.f32 %v645, %v585
    %v706 = vmax.f32 %v648, %v590
    %v707 = vmax.f32 %v649, %v591
    %v708 = vmax.f32 %v650, %v592
    %v709 = vmax.f32 %v651, %v593
    %v710 = vmax.f32 %v652, %v594
    %v711 = vmax.f32 %v653, %v595
    %v712 = vmax.f32 %v654, %v596
    %v713 = vmax.f32 %v655, %v597
    %v714 = vmax.f32 %v656, %v598
    %v715 = vmax.f32 %v657, %v599
    %v716 = vmax.f32 %v658, %v600
    %v717 = vmax.f32 %v659, %v601
    %v718 = vmax.f32 %v660, %v602
    %v719 = vmax.f32 %v661, %v603
    %v720 = vmax.f32 %v662, %v604
    %v721 = vmax.f32 %v663, %v605
    %v722 = vmax.f32 %v664, %v606
    %v723 = vmax.f32 %v665, %v607
    %v724 = vmax.f32 %v666, %v608
    %v725 = vmax.f32 %v667, %v609
    %v726 = vmax.f32 %v668, %v610
    %v727 = vmax.f32 %v669, %v611
    %v728 = vmax.f32 %v670, %v612
    %v729 = vmax.f32 %v671, %v613
    %v730 = vmax.f32 %v672, %v614
    %v731 = vmax.f32 %v673, %v615
    %v732 = vmax.f32 %v674, %v616
    %v733 = vmax.f32 %v675, %v617
    %vm734 = vcmask 31744
    %735 = vst.msk [vmem:[%s1] sm:$0xff] %vm734, %v618
    %736 = vst.msk [vmem:[%s1 + $0x8] sm:$0xff] %vm734, %v619
    %737 = vst.msk [vmem:[%s1 + $0x10] sm:$0xff] %vm734, %v678
    %738 = vst.msk [vmem:[%s1 + $0x18] sm:$0xff] %vm734, %v679
    %739 = vst.msk [vmem:[%s1 + $0x20] sm:$0xff] %vm734, %v680
    %740 = vst.msk [vmem:[%s1 + $0x28] sm:$0xff] %vm734, %v681
    %741 = vst.msk [vmem:[%s1 + $0x30] sm:$0xff] %vm734, %v682
    %742 = vst.msk [vmem:[%s1 + $0x38] sm:$0xff] %vm734, %v683
    %743 = vst.msk [vmem:[%s1 + $0x40] sm:$0xff] %vm734, %v684
    %744 = vst.msk [vmem:[%s1 + $0x48] sm:$0xff] %vm734, %v685
    %745 = vst.msk [vmem:[%s1 + $0x50] sm:$0xff] %vm734, %v686
    %746 = vst.msk [vmem:[%s1 + $0x58] sm:$0xff] %vm734, %v687
    %747 = vst.msk [vmem:[%s1 + $0x60] sm:$0xff] %vm734, %v688
    %748 = vst.msk [vmem:[%s1 + $0x68] sm:$0xff] %vm734, %v689
    %749 = vst.msk [vmem:[%s1 + $0x70] sm:$0xff] %vm734, %v690
    %750 = vst.msk [vmem:[%s1 + $0x78] sm:$0xff] %vm734, %v691
    %751 = vst.msk [vmem:[%s1 + $0x80] sm:$0xff] %vm734, %v692
    %752 = vst.msk [vmem:[%s1 + $0x88] sm:$0xff] %vm734, %v693
    %753 = vst.msk [vmem:[%s1 + $0x90] sm:$0xff] %vm734, %v694
    %754 = vst.msk [vmem:[%s1 + $0x98] sm:$0xff] %vm734, %v695
    %755 = vst.msk [vmem:[%s1 + $0xa0] sm:$0xff] %vm734, %v696
    %756 = vst.msk [vmem:[%s1 + $0xa8] sm:$0xff] %vm734, %v697
    %757 = vst.msk [vmem:[%s1 + $0xb0] sm:$0xff] %vm734, %v698
    %758 = vst.msk [vmem:[%s1 + $0xb8] sm:$0xff] %vm734, %v699
    %759 = vst.msk [vmem:[%s1 + $0xc0] sm:$0xff] %vm734, %v700
    %760 = vst.msk [vmem:[%s1 + $0xc8] sm:$0xff] %vm734, %v701
    %761 = vst.msk [vmem:[%s1 + $0xd0] sm:$0xff] %vm734, %v702
    %762 = vst.msk [vmem:[%s1 + $0xd8] sm:$0xff] %vm734, %v703
    %763 = vst.msk [vmem:[%s1 + $0xe0] sm:$0xff] %vm734, %v704
    %764 = vst.msk [vmem:[%s1 + $0xe8] sm:$0xff] %vm734, %v705
    %765 = vst.msk [vmem:[%s1 + $0xf0] sm:$0xff] %vm734, %v646
    %766 = vst.msk [vmem:[%s1 + $0xf8] sm:$0xff] %vm734, %v647
    %767 = vst.msk [vmem:[%s1 + $0x100] sm:$0xff] %vm734, %v648
    %768 = vst.msk [vmem:[%s1 + $0x108] sm:$0xff] %vm734, %v649
    %769 = vst.msk [vmem:[%s1 + $0x110] sm:$0xff] %vm734, %v706
    %770 = vst.msk [vmem:[%s1 + $0x118] sm:$0xff] %vm734, %v707
    %771 = vst.msk [vmem:[%s1 + $0x120] sm:$0xff] %vm734, %v708
    %772 = vst.msk [vmem:[%s1 + $0x128] sm:$0xff] %vm734, %v709
    %773 = vst.msk [vmem:[%s1 + $0x130] sm:$0xff] %vm734, %v710
    %774 = vst.msk [vmem:[%s1 + $0x138] sm:$0xff] %vm734, %v711
    %775 = vst.msk [vmem:[%s1 + $0x140] sm:$0xff] %vm734, %v712
    %776 = vst.msk [vmem:[%s1 + $0x148] sm:$0xff] %vm734, %v713
    %777 = vst.msk [vmem:[%s1 + $0x150] sm:$0xff] %vm734, %v714
    %778 = vst.msk [vmem:[%s1 + $0x158] sm:$0xff] %vm734, %v715
    %779 = vst.msk [vmem:[%s1 + $0x160] sm:$0xff] %vm734, %v716
    %780 = vst.msk [vmem:[%s1 + $0x168] sm:$0xff] %vm734, %v717
    %781 = vst.msk [vmem:[%s1 + $0x170] sm:$0xff] %vm734, %v718
    %782 = vst.msk [vmem:[%s1 + $0x178] sm:$0xff] %vm734, %v719
    %783 = vst.msk [vmem:[%s1 + $0x180] sm:$0xff] %vm734, %v720
    %784 = vst.msk [vmem:[%s1 + $0x188] sm:$0xff] %vm734, %v721
    %785 = vst.msk [vmem:[%s1 + $0x190] sm:$0xff] %vm734, %v722
    %786 = vst.msk [vmem:[%s1 + $0x198] sm:$0xff] %vm734, %v723
    %787 = vst.msk [vmem:[%s1 + $0x1a0] sm:$0xff] %vm734, %v724
    %788 = vst.msk [vmem:[%s1 + $0x1a8] sm:$0xff] %vm734, %v725
    %789 = vst.msk [vmem:[%s1 + $0x1b0] sm:$0xff] %vm734, %v726
    %790 = vst.msk [vmem:[%s1 + $0x1b8] sm:$0xff] %vm734, %v727
    %791 = vst.msk [vmem:[%s1 + $0x1c0] sm:$0xff] %vm734, %v728
    %792 = vst.msk [vmem:[%s1 + $0x1c8] sm:$0xff] %vm734, %v729
    %793 = vst.msk [vmem:[%s1 + $0x1d0] sm:$0xff] %vm734, %v730
    %794 = vst.msk [vmem:[%s1 + $0x1d8] sm:$0xff] %vm734, %v731
    %795 = vst.msk [vmem:[%s1 + $0x1e0] sm:$0xff] %vm734, %v732
    %796 = vst.msk [vmem:[%s1 + $0x1e8] sm:$0xff] %vm734, %v733
    %797 = vst.msk [vmem:[%s1 + $0x1f0] sm:$0xff] %vm734, %v676
    %798 = vst.msk [vmem:[%s1 + $0x1f8] sm:$0xff] %vm734, %v677
    %p799 = scmp.eq.s32.totalorder 0, 0
    // Predicated region
    $region6: #{tpu_custom_call.1} parent=1 // pred_check
      %p800 = pneg %p799
    $region7: #{tpu_custom_call.1} parent=1 // pred_check_branch
      %802 = sbr.rel (%p800) target = $region9
    $region8: #{tpu_custom_call.1} parent=1 // pred_region
      %vm803 = vcmask 24576
      %804 = vst.msk [vmem:[#allocation2] sm:$0x1] %vm803, 0.0
      %805 = vst.msk [vmem:[#allocation4] sm:$0x1] %vm803, 0.0
    $region9: #{tpu_custom_call.1} parent=1 // pred_fallthru
      _
    %v806 = vld [vmem:[#allocation2] sm:$0x1]
    %v807 = vsel %vm734, %v618, 0.0
    %v808 = vsel %vm734, %v619, 0.0
    %v809 = vadd.f32 %v807, %v808
    %v810 = vsel %vm734, %v678, 0.0
    %v811 = vadd.f32 %v809, %v810
    %v812 = vsel %vm734, %v679, 0.0
    %v813 = vadd.f32 %v811, %v812
    %v814 = vsel %vm734, %v680, 0.0
    %v815 = vadd.f32 %v813, %v814
    %v816 = vsel %vm734, %v681, 0.0
    %v817 = vadd.f32 %v815, %v816
    %v818 = vsel %vm734, %v682, 0.0
    %v819 = vadd.f32 %v817, %v818
    %v820 = vsel %vm734, %v683, 0.0
    %v821 = vadd.f32 %v819, %v820
    %v822 = vsel %vm734, %v684, 0.0
    %v823 = vadd.f32 %v821, %v822
    %v824 = vsel %vm734, %v685, 0.0
    %v825 = vadd.f32 %v823, %v824
    %v826 = vsel %vm734, %v686, 0.0
    %v827 = vadd.f32 %v825, %v826
    %v828 = vsel %vm734, %v687, 0.0
    %v829 = vadd.f32 %v827, %v828
    %v830 = vsel %vm734, %v688, 0.0
    %v831 = vadd.f32 %v829, %v830
    %v832 = vsel %vm734, %v689, 0.0
    %v833 = vadd.f32 %v831, %v832
    %v834 = vsel %vm734, %v690, 0.0
    %v835 = vadd.f32 %v833, %v834
    %v836 = vsel %vm734, %v691, 0.0
    %v837 = vadd.f32 %v835, %v836
    %v838 = vsel %vm734, %v692, 0.0
    %v839 = vadd.f32 %v837, %v838
    %v840 = vsel %vm734, %v693, 0.0
    %v841 = vadd.f32 %v839, %v840
    %v842 = vsel %vm734, %v694, 0.0
    %v843 = vadd.f32 %v841, %v842
    %v844 = vsel %vm734, %v695, 0.0
    %v845 = vadd.f32 %v843, %v844
    %v846 = vsel %vm734, %v696, 0.0
    %v847 = vadd.f32 %v845, %v846
    %v848 = vsel %vm734, %v697, 0.0
    %v849 = vadd.f32 %v847, %v848
    %v850 = vsel %vm734, %v698, 0.0
    %v851 = vadd.f32 %v849, %v850
    %v852 = vsel %vm734, %v699, 0.0
    %v853 = vadd.f32 %v851, %v852
    %v854 = vsel %vm734, %v700, 0.0
    %v855 = vadd.f32 %v853, %v854
    %v856 = vsel %vm734, %v701, 0.0
    %v857 = vadd.f32 %v855, %v856
    %v858 = vsel %vm734, %v702, 0.0
    %v859 = vadd.f32 %v857, %v858
    %v860 = vsel %vm734, %v703, 0.0
    %v861 = vadd.f32 %v859, %v860
    %v862 = vsel %vm734, %v704, 0.0
    %v863 = vadd.f32 %v861, %v862
    %v864 = vsel %vm734, %v705, 0.0
    %v865 = vadd.f32 %v863, %v864
    %v866 = vsel %vm734, %v646, 0.0
    %v867 = vadd.f32 %v865, %v866
    %v868 = vsel %vm734, %v647, 0.0
    %v869 = vadd.f32 %v867, %v868
    %v870 = vsel %vm734, %v648, 0.0
    %v871 = vadd.f32 %v869, %v870
    %v872 = vsel %vm734, %v649, 0.0
    %v873 = vadd.f32 %v871, %v872
    %v874 = vsel %vm734, %v706, 0.0
    %v875 = vadd.f32 %v873, %v874
    %v876 = vsel %vm734, %v707, 0.0
    %v877 = vadd.f32 %v875, %v876
    %v878 = vsel %vm734, %v708, 0.0
    %v879 = vadd.f32 %v877, %v878
    %v880 = vsel %vm734, %v709, 0.0
    %v881 = vadd.f32 %v879, %v880
    %v882 = vsel %vm734, %v710, 0.0
    %v883 = vadd.f32 %v881, %v882
    %v884 = vsel %vm734, %v711, 0.0
    %v885 = vadd.f32 %v883, %v884
    %v886 = vsel %vm734, %v712, 0.0
    %v887 = vadd.f32 %v885, %v886
    %v888 = vsel %vm734, %v713, 0.0
    %v889 = vadd.f32 %v887, %v888
    %v890 = vsel %vm734, %v714, 0.0
    %v891 = vadd.f32 %v889, %v890
    %v892 = vsel %vm734, %v715, 0.0
    %v893 = vadd.f32 %v891, %v892
    %v894 = vsel %vm734, %v716, 0.0
    %v895 = vadd.f32 %v893, %v894
    %v896 = vsel %vm734, %v717, 0.0
    %v897 = vadd.f32 %v895, %v896
    %v898 = vsel %vm734, %v718, 0.0
    %v899 = vadd.f32 %v897, %v898
    %v900 = vsel %vm734, %v719, 0.0
    %v901 = vadd.f32 %v899, %v900
    %v902 = vsel %vm734, %v720, 0.0
    %v903 = vadd.f32 %v901, %v902
    %v904 = vsel %vm734, %v721, 0.0
    %v905 = vadd.f32 %v903, %v904
    %v906 = vsel %vm734, %v722, 0.0
    %v907 = vadd.f32 %v905, %v906
    %v908 = vsel %vm734, %v723, 0.0
    %v909 = vadd.f32 %v907, %v908
    %v910 = vsel %vm734, %v724, 0.0
    %v911 = vadd.f32 %v909, %v910
    %v912 = vsel %vm734, %v725, 0.0
    %v913 = vadd.f32 %v911, %v912
    %v914 = vsel %vm734, %v726, 0.0
    %v915 = vadd.f32 %v913, %v914
    %v916 = vsel %vm734, %v727, 0.0
    %v917 = vadd.f32 %v915, %v916
    %v918 = vsel %vm734, %v728, 0.0
    %v919 = vadd.f32 %v917, %v918
    %v920 = vsel %vm734, %v729, 0.0
    %v921 = vadd.f32 %v919, %v920
    %v922 = vsel %vm734, %v730, 0.0
    %v923 = vadd.f32 %v921, %v922
    %v924 = vsel %vm734, %v731, 0.0
    %v925 = vadd.f32 %v923, %v924
    %v926 = vsel %vm734, %v732, 0.0
    %v927 = vadd.f32 %v925, %v926
    %v928 = vsel %vm734, %v733, 0.0
    %v929 = vadd.f32 %v927, %v928
    %v930 = vsel %vm734, %v676, 0.0
    %v931 = vadd.f32 %v929, %v930
    %v932 = vsel %vm734, %v677, 0.0
    %v933 = vadd.f32 %v931, %v932
    %v934 = vrot.slane %v933, 4
    %v935 = vadd.f32 %v933, %v934
    %v936 = vrot.slane %v935, 2
    %v937 = vadd.f32 %v935, %v936
    %v938 = vrot.slane %v937, 1
    %v939 = vadd.f32 %v937, %v938
    %v940 = vadd.f32 %v806, %v939
    %vm941 = vcmask 24576
    %942 = vst.msk [vmem:[#allocation2] sm:$0x1] %vm941, %v940
    %v943 = vld [vmem:[#allocation4] sm:$0x1]
    %v944 = vmul.f32 %v618, %v618
    %v945 = vmul.f32 %v619, %v619
    %v946 = vmul.f32 %v678, %v678
    %v947 = vmul.f32 %v679, %v679
    %v948 = vmul.f32 %v680, %v680
    %v949 = vmul.f32 %v681, %v681
    %v950 = vmul.f32 %v682, %v682
    %v951 = vmul.f32 %v683, %v683
    %v952 = vmul.f32 %v684, %v684
    %v953 = vmul.f32 %v685, %v685
    %v954 = vmul.f32 %v686, %v686
    %v955 = vmul.f32 %v687, %v687
    %v956 = vmul.f32 %v688, %v688
    %v957 = vmul.f32 %v689, %v689
    %v958 = vmul.f32 %v690, %v690
    %v959 = vmul.f32 %v691, %v691
    %v960 = vmul.f32 %v692, %v692
    %v961 = vmul.f32 %v693, %v693
    %v962 = vmul.f32 %v694, %v694
    %v963 = vmul.f32 %v695, %v695
    %v964 = vmul.f32 %v696, %v696
    %v965 = vmul.f32 %v697, %v697
    %v966 = vmul.f32 %v698, %v698
    %v967 = vmul.f32 %v699, %v699
    %v968 = vmul.f32 %v700, %v700
    %v969 = vmul.f32 %v701, %v701
    %v970 = vmul.f32 %v702, %v702
    %v971 = vmul.f32 %v703, %v703
    %v972 = vmul.f32 %v704, %v704
    %v973 = vmul.f32 %v705, %v705
    %v974 = vmul.f32 %v646, %v646
    %v975 = vmul.f32 %v647, %v647
    %v976 = vmul.f32 %v648, %v648
    %v977 = vmul.f32 %v649, %v649
    %v978 = vmul.f32 %v706, %v706
    %v979 = vmul.f32 %v707, %v707
    %v980 = vmul.f32 %v708, %v708
    %v981 = vmul.f32 %v709, %v709
    %v982 = vmul.f32 %v710, %v710
    %v983 = vmul.f32 %v711, %v711
    %v984 = vmul.f32 %v712, %v712
    %v985 = vmul.f32 %v713, %v713
    %v986 = vmul.f32 %v714, %v714
    %v987 = vmul.f32 %v715, %v715
    %v988 = vmul.f32 %v716, %v716
    %v989 = vmul.f32 %v717, %v717
    %v990 = vmul.f32 %v718, %v718
    %v991 = vmul.f32 %v719, %v719
    %v992 = vmul.f32 %v720, %v720
    %v993 = vmul.f32 %v721, %v721
    %v994 = vmul.f32 %v722, %v722
    %v995 = vmul.f32 %v723, %v723
    %v996 = vmul.f32 %v724, %v724
    %v997 = vmul.f32 %v725, %v725
    %v998 = vmul.f32 %v726, %v726
    %v999 = vmul.f32 %v727, %v727
    %v1000 = vmul.f32 %v728, %v728
    %v1001 = vmul.f32 %v729, %v729
    %v1002 = vmul.f32 %v730, %v730
    %v1003 = vmul.f32 %v731, %v731
    %v1004 = vmul.f32 %v732, %v732
    %v1005 = vmul.f32 %v733, %v733
    %v1006 = vmul.f32 %v676, %v676
    %v1007 = vmul.f32 %v677, %v677
    %v1008 = vsel %vm734, %v944, 0.0
    %v1009 = vsel %vm734, %v945, 0.0
    %v1010 = vadd.f32 %v1008, %v1009
    %v1011 = vsel %vm734, %v946, 0.0
    %v1012 = vadd.f32 %v1010, %v1011
    %v1013 = vsel %vm734, %v947, 0.0
    %v1014 = vadd.f32 %v1012, %v1013
    %v1015 = vsel %vm734, %v948, 0.0
    %v1016 = vadd.f32 %v1014, %v1015
    %v1017 = vsel %vm734, %v949, 0.0
    %v1018 = vadd.f32 %v1016, %v1017
    %v1019 = vsel %vm734, %v950, 0.0
    %v1020 = vadd.f32 %v1018, %v1019
    %v1021 = vsel %vm734, %v951, 0.0
    %v1022 = vadd.f32 %v1020, %v1021
    %v1023 = vsel %vm734, %v952, 0.0
    %v1024 = vadd.f32 %v1022, %v1023
    %v1025 = vsel %vm734, %v953, 0.0
    %v1026 = vadd.f32 %v1024, %v1025
    %v1027 = vsel %vm734, %v954, 0.0
    %v1028 = vadd.f32 %v1026, %v1027
    %v1029 = vsel %vm734, %v955, 0.0
    %v1030 = vadd.f32 %v1028, %v1029
    %v1031 = vsel %vm734, %v956, 0.0
    %v1032 = vadd.f32 %v1030, %v1031
    %v1033 = vsel %vm734, %v957, 0.0
    %v1034 = vadd.f32 %v1032, %v1033
    %v1035 = vsel %vm734, %v958, 0.0
    %v1036 = vadd.f32 %v1034, %v1035
    %v1037 = vsel %vm734, %v959, 0.0
    %v1038 = vadd.f32 %v1036, %v1037
    %v1039 = vsel %vm734, %v960, 0.0
    %v1040 = vadd.f32 %v1038, %v1039
    %v1041 = vsel %vm734, %v961, 0.0
    %v1042 = vadd.f32 %v1040, %v1041
    %v1043 = vsel %vm734, %v962, 0.0
    %v1044 = vadd.f32 %v1042, %v1043
    %v1045 = vsel %vm734, %v963, 0.0
    %v1046 = vadd.f32 %v1044, %v1045
    %v1047 = vsel %vm734, %v964, 0.0
    %v1048 = vadd.f32 %v1046, %v1047
    %v1049 = vsel %vm734, %v965, 0.0
    %v1050 = vadd.f32 %v1048, %v1049
    %v1051 = vsel %vm734, %v966, 0.0
    %v1052 = vadd.f32 %v1050, %v1051
    %v1053 = vsel %vm734, %v967, 0.0
    %v1054 = vadd.f32 %v1052, %v1053
    %v1055 = vsel %vm734, %v968, 0.0
    %v1056 = vadd.f32 %v1054, %v1055
    %v1057 = vsel %vm734, %v969, 0.0
    %v1058 = vadd.f32 %v1056, %v1057
    %v1059 = vsel %vm734, %v970, 0.0
    %v1060 = vadd.f32 %v1058, %v1059
    %v1061 = vsel %vm734, %v971, 0.0
    %v1062 = vadd.f32 %v1060, %v1061
    %v1063 = vsel %vm734, %v972, 0.0
    %v1064 = vadd.f32 %v1062, %v1063
    %v1065 = vsel %vm734, %v973, 0.0
    %v1066 = vadd.f32 %v1064, %v1065
    %v1067 = vsel %vm734, %v974, 0.0
    %v1068 = vadd.f32 %v1066, %v1067
    %v1069 = vsel %vm734, %v975, 0.0
    %v1070 = vadd.f32 %v1068, %v1069
    %v1071 = vsel %vm734, %v976, 0.0
    %v1072 = vadd.f32 %v1070, %v1071
    %v1073 = vsel %vm734, %v977, 0.0
    %v1074 = vadd.f32 %v1072, %v1073
    %v1075 = vsel %vm734, %v978, 0.0
    %v1076 = vadd.f32 %v1074, %v1075
    %v1077 = vsel %vm734, %v979, 0.0
    %v1078 = vadd.f32 %v1076, %v1077
    %v1079 = vsel %vm734, %v980, 0.0
    %v1080 = vadd.f32 %v1078, %v1079
    %v1081 = vsel %vm734, %v981, 0.0
    %v1082 = vadd.f32 %v1080, %v1081
    %v1083 = vsel %vm734, %v982, 0.0
    %v1084 = vadd.f32 %v1082, %v1083
    %v1085 = vsel %vm734, %v983, 0.0
    %v1086 = vadd.f32 %v1084, %v1085
    %v1087 = vsel %vm734, %v984, 0.0
    %v1088 = vadd.f32 %v1086, %v1087
    %v1089 = vsel %vm734, %v985, 0.0
    %v1090 = vadd.f32 %v1088, %v1089
    %v1091 = vsel %vm734, %v986, 0.0
    %v1092 = vadd.f32 %v1090, %v1091
    %v1093 = vsel %vm734, %v987, 0.0
    %v1094 = vadd.f32 %v1092, %v1093
    %v1095 = vsel %vm734, %v988, 0.0
    %v1096 = vadd.f32 %v1094, %v1095
    %v1097 = vsel %vm734, %v989, 0.0
    %v1098 = vadd.f32 %v1096, %v1097
    %v1099 = vsel %vm734, %v990, 0.0
    %v1100 = vadd.f32 %v1098, %v1099
    %v1101 = vsel %vm734, %v991, 0.0
    %v1102 = vadd.f32 %v1100, %v1101
    %v1103 = vsel %vm734, %v992, 0.0
    %v1104 = vadd.f32 %v1102, %v1103
    %v1105 = vsel %vm734, %v993, 0.0
    %v1106 = vadd.f32 %v1104, %v1105
    %v1107 = vsel %vm734, %v994, 0.0
    %v1108 = vadd.f32 %v1106, %v1107
    %v1109 = vsel %vm734, %v995, 0.0
    %v1110 = vadd.f32 %v1108, %v1109
    %v1111 = vsel %vm734, %v996, 0.0
    %v1112 = vadd.f32 %v1110, %v1111
    %v1113 = vsel %vm734, %v997, 0.0
    %v1114 = vadd.f32 %v1112, %v1113
    %v1115 = vsel %vm734, %v998, 0.0
    %v1116 = vadd.f32 %v1114, %v1115
    %v1117 = vsel %vm734, %v999, 0.0
    %v1118 = vadd.f32 %v1116, %v1117
    %v1119 = vsel %vm734, %v1000, 0.0
    %v1120 = vadd.f32 %v1118, %v1119
    %v1121 = vsel %vm734, %v1001, 0.0
    %v1122 = vadd.f32 %v1120, %v1121
    %v1123 = vsel %vm734, %v1002, 0.0
    %v1124 = vadd.f32 %v1122, %v1123
    %v1125 = vsel %vm734, %v1003, 0.0
    %v1126 = vadd.f32 %v1124, %v1125
    %v1127 = vsel %vm734, %v1004, 0.0
    %v1128 = vadd.f32 %v1126, %v1127
    %v1129 = vsel %vm734, %v1005, 0.0
    %v1130 = vadd.f32 %v1128, %v1129
    %v1131 = vsel %vm734, %v1006, 0.0
    %v1132 = vadd.f32 %v1130, %v1131
    %v1133 = vsel %vm734, %v1007, 0.0
    %v1134 = vadd.f32 %v1132, %v1133
    %v1135 = vrot.slane %v1134, 4
    %v1136 = vadd.f32 %v1134, %v1135
    %v1137 = vrot.slane %v1136, 2
    %v1138 = vadd.f32 %v1136, %v1137
    %v1139 = vrot.slane %v1138, 1
    %v1140 = vadd.f32 %v1138, %v1139
    %v1141 = vadd.f32 %v943, %v1140
    %1142 = vst.msk [vmem:[#allocation4] sm:$0x1] %vm941, %v1141
    // Predicated region
    $region10: #{tpu_custom_call.1} parent=1 // pred_check
      _
    $region11: #{tpu_custom_call.1} parent=1 // pred_check_branch
      %1144 = sbr.rel (0) target = $region13
    $region12: #{tpu_custom_call.1} parent=1 // pred_region
      _
    $region13: #{tpu_custom_call.1} parent=1 // pred_fallthru
      _
    // Predicated region
    $region14: #{tpu_custom_call.1} parent=1 // pred_check
      _
    $region15: #{tpu_custom_call.1} parent=1 // pred_check_branch
      %1146 = sbr.rel (0) target = $region17
    $region16: #{tpu_custom_call.1} parent=1 // pred_region
      %1148 = vsyncadd [#allocation3], 0
      %s1150 = sshll.u32 [#allocation2], 4
      %s1151 = int_to_ptr.vmem [resolvable:$true] %s1150
      %s1152 = sshll.u32 %s2, 4
      %s1153 = int_to_ptr.hbm [resolvable:$true] %s1152
      %1155 = dma.vmem_to_hbm [thread:$0]  %s1151, 16, %s1153, [#allocation3]
    $region17: #{tpu_custom_call.1} parent=1 // pred_fallthru
      _
    // Predicated region
    $region18: #{tpu_custom_call.1} parent=1 // pred_check
      _
    $region19: #{tpu_custom_call.1} parent=1 // pred_check_branch
      %1157 = sbr.rel (0) target = $region21
    $region20: #{tpu_custom_call.1} parent=1 // pred_region
      %1159 = vsyncadd [#allocation5], 0
      %s1161 = sshll.u32 [#allocation4], 4
      %s1162 = int_to_ptr.vmem [resolvable:$true] %s1161
      %s1163 = sshll.u32 %s3, 4
      %s1164 = int_to_ptr.hbm [resolvable:$true] %s1163
      %1166 = dma.vmem_to_hbm [thread:$0]  %s1162, 16, %s1164, [#allocation5]
    $region21: #{tpu_custom_call.1} parent=1 // pred_fallthru
      _
    // Predicated region
    $region22: #{tpu_custom_call.1} parent=1 // pred_check
      _
    $region23: #{tpu_custom_call.1} parent=1 // pred_check_branch
      %1168 = sbr.rel (0) target = $region25
    $region24: #{tpu_custom_call.1} parent=1 // pred_region
      _
    $region25: #{tpu_custom_call.1} parent=1 // pred_fallthru
      _
    // Predicated region
    $region26: #{tpu_custom_call.1} parent=1 // pred_check
      _
    $region27: #{tpu_custom_call.1} parent=1 // pred_check_branch
      %1170 = sbr.rel (0) target = $region29
    $region28: #{tpu_custom_call.1} parent=1 // pred_region
      %1172 = dma.done [#allocation3], 16
    $region29: #{tpu_custom_call.1} parent=1 // pred_fallthru
      _
    // Predicated region
    $region30: #{tpu_custom_call.1} parent=1 // pred_check
      _
    $region31: #{tpu_custom_call.1} parent=1 // pred_check_branch
      %1174 = sbr.rel (0) target = $region33
    $region32: #{tpu_custom_call.1} parent=1 // pred_region
      %1176 = dma.done [#allocation5], 16
    $region33: #{tpu_custom_call.1} parent=1 // pred_fallthru
      _
    %1177 = vsyncpa [#allocation3], 1
    %1178 = vsyncpa [#allocation5], 1

</llo_original>
